<compile_context>
chip_gen: v7x
topology: tpu7x:2x2x1
jax: 0.10.0
libtpu: 0.0.40
codegen_flags: <defaults>
</compile_context>

<pallas_src>
import functools

import jax
import jax.numpy as jnp
import numpy as np
from jax.experimental import pallas as pl
from jax.experimental.pallas import tpu as pltpu

WIN_SIZE = 7
K1 = 0.01
K2 = 0.03


def _ssim_block_kernel(x_ref, y_ref, cmat_ref, c1_ref, c2_ref, out_ref, *, win):
    # x_ref, y_ref  : (TB, H, kW)   lane-packed image tiles (cast to f32 here).
    # cmat_ref      : (kW, kOW)     banded block-diagonal column-sum matrix.
    # c1_ref, c2_ref: (TB, 1, kOW)  per-image (49*k*data_range)^2, lane-repeated.
    # out_ref       : (TB, 1, kOW)  per-(pack, lane-column) sums of the SSIM map.
    x = x_ref[...].astype(jnp.float32)
    y = y_ref[...].astype(jnp.float32)
    cmat = cmat_ref[...]
    c1 = c1_ref[...]
    c2 = c2_ref[...]

    tb, H, _ = x.shape
    oh = H - win + 1

    npix = float(win * win)
    cov_norm = npix / (npix - 1.0)

    # Hoist second-moment products out of the filter (3 muls total, not 3*49).
    xx = x * x
    yy = y * y
    xy = x * y

    def _rowsum(a):                       # (TB, H, kW) -> (TB, oh, kW)
        acc = a[:, 0:oh, :]
        for dy in range(1, win):
            acc = acc + a[:, dy:dy + oh, :]
        return acc

    def _boxsum(a):                       # un-normalised 7x7 box sum
        r = _rowsum(a)
        # Column (lane) direction on the MXU: banded 0/1 matmul per image in
        # the block (TB is a small static constant, so plain 2-D dots).
        cols = [jnp.dot(r[i], cmat, preferred_element_type=jnp.float32)
                for i in range(tb)]
        return jnp.stack(cols, axis=0)    # (TB, oh, kOW)

    sx = _boxsum(x)
    sy = _boxsum(y)
    sxx = _boxsum(xx)
    syy = _boxsum(yy)
    sxy = _boxsum(xy)

    # SSIM with the 1/49 normalisation cancelled:    S = A1*A2 / (B1*B2)
    #   A1 = 2*Sx*Sy + C1'               C1' = (49*k1*dr)^2
    #   A2 = 2*cov*(49*Sxy - Sx*Sy) + C2'
    #   B1 = Sx^2 + Sy^2 + C1'
    #   B2 = cov*(49*(Sxx+Syy) - Sx^2 - Sy^2) + C2'
    sxsy = sx * sy
    sx2 = sx * sx
    sy2 = sy * sy

    a1 = 2.0 * sxsy + c1
    a2 = 2.0 * cov_norm * (npix * sxy - sxsy) + c2
    b1 = sx2 + sy2 + c1
    b2 = cov_norm * (npix * (sxx + syy) - sx2 - sy2) + c2

    denom = b1 * b2
    inv = pl.reciprocal(denom, approx=True)      # EUP slot, ~2^-12 rel error
    inv = inv * (2.0 - denom * inv)              # 1 Newton step -> f32 accurate
    s = (a1 * a2) * inv                          # (TB, oh, kOW)

    out_ref[...] = jnp.sum(s, axis=1, keepdims=True)


def ssim_loss(X, Y, data_range, *, win_size=WIN_SIZE, k1=K1, k2=K2,
              pack_block=8, vmem_budget_bytes=24 * 1024 * 1024):
    """X, Y: (N, 1, H, W); data_range: (N,). Returns scalar 1 - mean(SSIM map)."""
    N, C, H, W = X.shape
    assert C == 1, "SSIM conv weight is (1,1,w,w) -> single-channel inputs"
    assert H >= win_size and W >= win_size
    oh = H - win_size + 1
    ow = W - win_size + 1

    # Lane packing factor: put kpack images side by side along the last axis so
    # VMEM tiles are ~128 lanes wide for small W.
    kpack = max(1, min(128 // W, N)) if W < 128 else 1
    kW = kpack * W
    kow = kpack * ow

    # Batch the packs; clamp the pack block so the per-step footprint
    # (2 inputs x 2 pipeline buffers + ~12 f32 temporaries of tile size)
    # stays inside the budget (safe on v7x 64 MiB as well as v5e/v6e 128 MiB).
    G = -(-N // kpack)                                    # packs of real images
    bytes_per_pack = H * kW * (4 * X.dtype.itemsize + 12 * 4)
    tb = int(max(1, min(pack_block, G,
                        vmem_budget_bytes // max(1, bytes_per_pack))))
    n_blocks = -(-G // tb)
    gp = n_blocks * tb                                    # padded pack count
    n_pad_imgs = gp * kpack - N

    # TODO(synk): for very large H*W (tb already 1 and still over budget),
    # strip-tile H with a (win-1)-row halo as a second "parallel" grid axis.

    x = X.reshape(N, H, W)
    y = Y.reshape(N, H, W)
    dr = data_range.astype(jnp.float32).reshape(N)
    if n_pad_imgs:
        # Padded images are zeros with dr=1; their outputs are dropped below,
        # so no in-kernel mask multiply is needed.
        x = jnp.concatenate([x, jnp.zeros((n_pad_imgs, H, W), x.dtype)], axis=0)
        y = jnp.concatenate([y, jnp.zeros((n_pad_imgs, H, W), y.dtype)], axis=0)
        dr = jnp.concatenate([dr, jnp.ones((n_pad_imgs,), jnp.float32)], axis=0)

    # (gp*kpack, H, W) -> (gp, H, kpack*W): images side by side along lanes.
    xp = x.reshape(gp, kpack, H, W).transpose(0, 2, 1, 3).reshape(gp, H, kW)
    yp = y.reshape(gp, kpack, H, W).transpose(0, 2, 1, 3).reshape(gp, H, kW)

    # Per-image constants with the 49^2 normalisation folded in, repeated over
    # each image's `ow` output lanes (no per-image scalar work in-kernel).
    npix = float(win_size * win_size)
    c1 = (npix * k1 * dr) ** 2
    c2 = (npix * k2 * dr) ** 2
    c1lane = jnp.broadcast_to(c1.reshape(gp, kpack, 1),
                              (gp, kpack, ow)).reshape(gp, 1, kow)
    c2lane = jnp.broadcast_to(c2.reshape(gp, kpack, 1),
                              (gp, kpack, ow)).reshape(gp, 1, kow)

    # Static banded 0/1 column-sum matrix, block-diagonal across packed images
    # (the box filter never crosses an image seam).
    cmat_np = np.zeros((kW, kow), np.float32)
    for j in range(kpack):
        for c in range(ow):
            cmat_np[j * W + c: j * W + c + win_size, j * ow + c] = 1.0
    cmat = jnp.asarray(cmat_np)

    kernel = functools.partial(_ssim_block_kernel, win=win_size)

    col_sums = pl.pallas_call(
        kernel,
        out_shape=jax.ShapeDtypeStruct((gp, 1, kow), jnp.float32),
        grid=(n_blocks,),
        in_specs=[
            pl.BlockSpec((tb, H, kW), lambda b: (b, 0, 0)),
            pl.BlockSpec((tb, H, kW), lambda b: (b, 0, 0)),
            pl.BlockSpec((kW, kow), lambda b: (0, 0)),     # resident constant
            pl.BlockSpec((tb, 1, kow), lambda b: (b, 0, 0)),
            pl.BlockSpec((tb, 1, kow), lambda b: (b, 0, 0)),
        ],
        out_specs=pl.BlockSpec((tb, 1, kow), lambda b: (b, 0, 0)),
        compiler_params=pltpu.CompilerParams(
            dimension_semantics=("parallel",),
            vmem_limit_bytes=32 * 1024 * 1024),
    )(xp, yp, cmat, c1lane, c2lane)

    # Wrapper glue: per-image sums, drop padded images, global mean.
    per_image = jnp.sum(col_sums.reshape(gp, kpack, ow), axis=-1).reshape(gp * kpack)
    total = jnp.sum(per_image[:N])
    return 1.0 - total / (N * oh * ow)


def _ssim_loss_ref(X, Y, data_range, *, win_size=WIN_SIZE, k1=K1, k2=K2):
    """Pure-JAX reference replicating the PyTorch forward semantics."""
    N, C, H, W = X.shape
    x = X.reshape(N, H, W).astype(jnp.float32)
    y = Y.reshape(N, H, W).astype(jnp.float32)
    dr = data_range.astype(jnp.float32)[:, None, None]
    oh, ow = H - win_size + 1, W - win_size + 1

    def box(a):
        out = jnp.zeros((N, oh, ow), jnp.float32)
        for dy in range(win_size):
            for dx in range(win_size):
                out = out + a[:, dy:dy + oh, dx:dx + ow]
        return out / (win_size * win_size)

    npix = win_size * win_size
    cov_norm = npix / (npix - 1)
    ux, uy = box(x), box(y)
    uxx, uyy, uxy = box(x * x), box(y * y), box(x * y)
    vx = cov_norm * (uxx - ux * ux)
    vy = cov_norm * (uyy - uy * uy)
    vxy = cov_norm * (uxy - ux * uy)
    c1 = (k1 * dr) ** 2
    c2 = (k2 * dr) ** 2
    a1, a2 = 2 * ux * uy + c1, 2 * vxy + c2
    b1, b2 = ux * ux + uy * uy + c1, vx + vy + c2
    s = a1 * a2 / (b1 * b2)
    return 1.0 - jnp.mean(s)


if __name__ == "__main__":
    key = jax.random.PRNGKey(0)
    kx, ky = jax.random.split(key)
    N, C, H, W = 2, 1, 16, 16

    X = jax.random.uniform(kx, (N, C, H, W), dtype=jnp.float32)
    Y = jax.random.uniform(ky, (N, C, H, W), dtype=jnp.float32)
    data_range = jnp.max(jnp.abs(X.reshape(N, -1)), axis=1)  # (N,)

    loss = jax.block_until_ready(ssim_loss(X, Y, data_range))
    ref = jax.block_until_ready(_ssim_loss_ref(X, Y, data_range))
    assert jnp.allclose(loss, ref, atol=2e-5, rtol=2e-5), (loss, ref)

    # Multi-image + ragged path: 10 images -> 8 packed per 128-lane stripe,
    # 6 zero-padded images whose outputs are dropped in the wrapper glue.
    N2 = 10
    X2 = jax.random.uniform(jax.random.PRNGKey(1), (N2, 1, H, W), jnp.float32)
    Y2 = jax.random.uniform(jax.random.PRNGKey(2), (N2, 1, H, W), jnp.float32)
    dr2 = jnp.max(jnp.abs(X2.reshape(N2, -1)), axis=1)
    loss2 = jax.block_until_ready(ssim_loss(X2, Y2, dr2))
    ref2 = jax.block_until_ready(_ssim_loss_ref(X2, Y2, dr2))
    assert jnp.allclose(loss2, ref2, atol=2e-5, rtol=2e-5), (loss2, ref2)

    print("KERNEL_OK")
</pallas_src>

<mosaic_0001>
module attributes {stable_mosaic.version = 11 : i64} {
  func.func @_ssim_block_kernel(%arg0: i32, %arg1: memref<1x16x32xf32, #tpu.memory_space<vmem>>, %arg2: memref<1x16x32xf32, #tpu.memory_space<vmem>>, %arg3: memref<32x20xf32, #tpu.memory_space<vmem>>, %arg4: memref<1x1x20xf32, #tpu.memory_space<vmem>>, %arg5: memref<1x1x20xf32, #tpu.memory_space<vmem>>, %arg6: memref<1x1x20xf32, #tpu.memory_space<vmem>>) attributes {dimension_semantics = [#tpu.dimension_semantics<parallel>], iteration_bounds = array<i64: 1>, scalar_prefetch = 0 : i64, scratch_operands = 0 : i64, tpu.core_type = #tpu.core_type<tc>, window_params = [{transform_indices = @transform_0, window_bounds = array<i64: 1, 16, 32>}, {transform_indices = @transform_1, window_bounds = array<i64: 1, 16, 32>}, {pipeline_mode = #tpu.pipeline_mode<synchronous>, transform_indices = @transform_2, window_bounds = array<i64: 32, 20>}, {transform_indices = @transform_3, window_bounds = array<i64: 1, 1, 20>}, {transform_indices = @transform_4, window_bounds = array<i64: 1, 1, 20>}, {transform_indices = @transform_5, window_bounds = array<i64: 1, 1, 20>}]} {
    %c0 = arith.constant 0 : index
    %c0_0 = arith.constant 0 : index
    %c0_1 = arith.constant 0 : index
    %0 = vector.load %arg1[%c0, %c0_0, %c0_1] : memref<1x16x32xf32, #tpu.memory_space<vmem>>, vector<1x16x32xf32>
    %c0_2 = arith.constant 0 : index
    %c0_3 = arith.constant 0 : index
    %c0_4 = arith.constant 0 : index
    %1 = vector.load %arg2[%c0_2, %c0_3, %c0_4] : memref<1x16x32xf32, #tpu.memory_space<vmem>>, vector<1x16x32xf32>
    %c0_5 = arith.constant 0 : index
    %c0_6 = arith.constant 0 : index
    %2 = vector.load %arg3[%c0_5, %c0_6] : memref<32x20xf32, #tpu.memory_space<vmem>>, vector<32x20xf32>
    %c0_7 = arith.constant 0 : index
    %c0_8 = arith.constant 0 : index
    %c0_9 = arith.constant 0 : index
    %3 = vector.load %arg4[%c0_7, %c0_8, %c0_9] : memref<1x1x20xf32, #tpu.memory_space<vmem>>, vector<1x1x20xf32>
    %c0_10 = arith.constant 0 : index
    %c0_11 = arith.constant 0 : index
    %c0_12 = arith.constant 0 : index
    %4 = vector.load %arg5[%c0_10, %c0_11, %c0_12] : memref<1x1x20xf32, #tpu.memory_space<vmem>>, vector<1x1x20xf32>
    %5 = arith.mulf %0, %0 : vector<1x16x32xf32>
    %6 = arith.mulf %1, %1 : vector<1x16x32xf32>
    %7 = arith.mulf %0, %1 : vector<1x16x32xf32>
    %8 = vector.extract_strided_slice %0 {offsets = [0, 0, 0], sizes = [1, 10, 32], strides = [1, 1, 1]} : vector<1x16x32xf32> to vector<1x10x32xf32>
    %9 = vector.extract_strided_slice %0 {offsets = [0, 1, 0], sizes = [1, 10, 32], strides = [1, 1, 1]} : vector<1x16x32xf32> to vector<1x10x32xf32>
    %10 = arith.addf %8, %9 : vector<1x10x32xf32>
    %11 = vector.extract_strided_slice %0 {offsets = [0, 2, 0], sizes = [1, 10, 32], strides = [1, 1, 1]} : vector<1x16x32xf32> to vector<1x10x32xf32>
    %12 = arith.addf %10, %11 : vector<1x10x32xf32>
    %13 = vector.extract_strided_slice %0 {offsets = [0, 3, 0], sizes = [1, 10, 32], strides = [1, 1, 1]} : vector<1x16x32xf32> to vector<1x10x32xf32>
    %14 = arith.addf %12, %13 : vector<1x10x32xf32>
    %15 = vector.extract_strided_slice %0 {offsets = [0, 4, 0], sizes = [1, 10, 32], strides = [1, 1, 1]} : vector<1x16x32xf32> to vector<1x10x32xf32>
    %16 = arith.addf %14, %15 : vector<1x10x32xf32>
    %17 = vector.extract_strided_slice %0 {offsets = [0, 5, 0], sizes = [1, 10, 32], strides = [1, 1, 1]} : vector<1x16x32xf32> to vector<1x10x32xf32>
    %18 = arith.addf %16, %17 : vector<1x10x32xf32>
    %19 = vector.extract_strided_slice %0 {offsets = [0, 6, 0], sizes = [1, 10, 32], strides = [1, 1, 1]} : vector<1x16x32xf32> to vector<1x10x32xf32>
    %20 = arith.addf %18, %19 : vector<1x10x32xf32>
    %21 = vector.shape_cast %20 : vector<1x10x32xf32> to vector<10x32xf32>
    %cst = arith.constant dense<0.000000e+00> : vector<10x20xf32>
    %22 = tpu.matmul %21, %2, %cst {dimension_numbers = #tpu.dot_dimension_numbers<[1], [0], [0], [1], [0, 0, 1, 1], [], []>} : vector<10x32xf32>, vector<32x20xf32>, vector<10x20xf32> -> vector<10x20xf32>
    %23 = vector.shape_cast %22 : vector<10x20xf32> to vector<1x10x20xf32>
    %24 = vector.extract_strided_slice %1 {offsets = [0, 0, 0], sizes = [1, 10, 32], strides = [1, 1, 1]} : vector<1x16x32xf32> to vector<1x10x32xf32>
    %25 = vector.extract_strided_slice %1 {offsets = [0, 1, 0], sizes = [1, 10, 32], strides = [1, 1, 1]} : vector<1x16x32xf32> to vector<1x10x32xf32>
    %26 = arith.addf %24, %25 : vector<1x10x32xf32>
    %27 = vector.extract_strided_slice %1 {offsets = [0, 2, 0], sizes = [1, 10, 32], strides = [1, 1, 1]} : vector<1x16x32xf32> to vector<1x10x32xf32>
    %28 = arith.addf %26, %27 : vector<1x10x32xf32>
    %29 = vector.extract_strided_slice %1 {offsets = [0, 3, 0], sizes = [1, 10, 32], strides = [1, 1, 1]} : vector<1x16x32xf32> to vector<1x10x32xf32>
    %30 = arith.addf %28, %29 : vector<1x10x32xf32>
    %31 = vector.extract_strided_slice %1 {offsets = [0, 4, 0], sizes = [1, 10, 32], strides = [1, 1, 1]} : vector<1x16x32xf32> to vector<1x10x32xf32>
    %32 = arith.addf %30, %31 : vector<1x10x32xf32>
    %33 = vector.extract_strided_slice %1 {offsets = [0, 5, 0], sizes = [1, 10, 32], strides = [1, 1, 1]} : vector<1x16x32xf32> to vector<1x10x32xf32>
    %34 = arith.addf %32, %33 : vector<1x10x32xf32>
    %35 = vector.extract_strided_slice %1 {offsets = [0, 6, 0], sizes = [1, 10, 32], strides = [1, 1, 1]} : vector<1x16x32xf32> to vector<1x10x32xf32>
    %36 = arith.addf %34, %35 : vector<1x10x32xf32>
    %37 = vector.shape_cast %36 : vector<1x10x32xf32> to vector<10x32xf32>
    %cst_13 = arith.constant dense<0.000000e+00> : vector<10x20xf32>
    %38 = tpu.matmul %37, %2, %cst_13 {dimension_numbers = #tpu.dot_dimension_numbers<[1], [0], [0], [1], [0, 0, 1, 1], [], []>} : vector<10x32xf32>, vector<32x20xf32>, vector<10x20xf32> -> vector<10x20xf32>
    %39 = vector.shape_cast %38 : vector<10x20xf32> to vector<1x10x20xf32>
    %40 = vector.extract_strided_slice %5 {offsets = [0, 0, 0], sizes = [1, 10, 32], strides = [1, 1, 1]} : vector<1x16x32xf32> to vector<1x10x32xf32>
    %41 = vector.extract_strided_slice %5 {offsets = [0, 1, 0], sizes = [1, 10, 32], strides = [1, 1, 1]} : vector<1x16x32xf32> to vector<1x10x32xf32>
    %42 = arith.addf %40, %41 : vector<1x10x32xf32>
    %43 = vector.extract_strided_slice %5 {offsets = [0, 2, 0], sizes = [1, 10, 32], strides = [1, 1, 1]} : vector<1x16x32xf32> to vector<1x10x32xf32>
    %44 = arith.addf %42, %43 : vector<1x10x32xf32>
    %45 = vector.extract_strided_slice %5 {offsets = [0, 3, 0], sizes = [1, 10, 32], strides = [1, 1, 1]} : vector<1x16x32xf32> to vector<1x10x32xf32>
    %46 = arith.addf %44, %45 : vector<1x10x32xf32>
    %47 = vector.extract_strided_slice %5 {offsets = [0, 4, 0], sizes = [1, 10, 32], strides = [1, 1, 1]} : vector<1x16x32xf32> to vector<1x10x32xf32>
    %48 = arith.addf %46, %47 : vector<1x10x32xf32>
    %49 = vector.extract_strided_slice %5 {offsets = [0, 5, 0], sizes = [1, 10, 32], strides = [1, 1, 1]} : vector<1x16x32xf32> to vector<1x10x32xf32>
    %50 = arith.addf %48, %49 : vector<1x10x32xf32>
    %51 = vector.extract_strided_slice %5 {offsets = [0, 6, 0], sizes = [1, 10, 32], strides = [1, 1, 1]} : vector<1x16x32xf32> to vector<1x10x32xf32>
    %52 = arith.addf %50, %51 : vector<1x10x32xf32>
    %53 = vector.shape_cast %52 : vector<1x10x32xf32> to vector<10x32xf32>
    %cst_14 = arith.constant dense<0.000000e+00> : vector<10x20xf32>
    %54 = tpu.matmul %53, %2, %cst_14 {dimension_numbers = #tpu.dot_dimension_numbers<[1], [0], [0], [1], [0, 0, 1, 1], [], []>} : vector<10x32xf32>, vector<32x20xf32>, vector<10x20xf32> -> vector<10x20xf32>
    %55 = vector.shape_cast %54 : vector<10x20xf32> to vector<1x10x20xf32>
    %56 = vector.extract_strided_slice %6 {offsets = [0, 0, 0], sizes = [1, 10, 32], strides = [1, 1, 1]} : vector<1x16x32xf32> to vector<1x10x32xf32>
    %57 = vector.extract_strided_slice %6 {offsets = [0, 1, 0], sizes = [1, 10, 32], strides = [1, 1, 1]} : vector<1x16x32xf32> to vector<1x10x32xf32>
    %58 = arith.addf %56, %57 : vector<1x10x32xf32>
    %59 = vector.extract_strided_slice %6 {offsets = [0, 2, 0], sizes = [1, 10, 32], strides = [1, 1, 1]} : vector<1x16x32xf32> to vector<1x10x32xf32>
    %60 = arith.addf %58, %59 : vector<1x10x32xf32>
    %61 = vector.extract_strided_slice %6 {offsets = [0, 3, 0], sizes = [1, 10, 32], strides = [1, 1, 1]} : vector<1x16x32xf32> to vector<1x10x32xf32>
    %62 = arith.addf %60, %61 : vector<1x10x32xf32>
    %63 = vector.extract_strided_slice %6 {offsets = [0, 4, 0], sizes = [1, 10, 32], strides = [1, 1, 1]} : vector<1x16x32xf32> to vector<1x10x32xf32>
    %64 = arith.addf %62, %63 : vector<1x10x32xf32>
    %65 = vector.extract_strided_slice %6 {offsets = [0, 5, 0], sizes = [1, 10, 32], strides = [1, 1, 1]} : vector<1x16x32xf32> to vector<1x10x32xf32>
    %66 = arith.addf %64, %65 : vector<1x10x32xf32>
    %67 = vector.extract_strided_slice %6 {offsets = [0, 6, 0], sizes = [1, 10, 32], strides = [1, 1, 1]} : vector<1x16x32xf32> to vector<1x10x32xf32>
    %68 = arith.addf %66, %67 : vector<1x10x32xf32>
    %69 = vector.shape_cast %68 : vector<1x10x32xf32> to vector<10x32xf32>
    %cst_15 = arith.constant dense<0.000000e+00> : vector<10x20xf32>
    %70 = tpu.matmul %69, %2, %cst_15 {dimension_numbers = #tpu.dot_dimension_numbers<[1], [0], [0], [1], [0, 0, 1, 1], [], []>} : vector<10x32xf32>, vector<32x20xf32>, vector<10x20xf32> -> vector<10x20xf32>
    %71 = vector.shape_cast %70 : vector<10x20xf32> to vector<1x10x20xf32>
    %72 = vector.extract_strided_slice %7 {offsets = [0, 0, 0], sizes = [1, 10, 32], strides = [1, 1, 1]} : vector<1x16x32xf32> to vector<1x10x32xf32>
    %73 = vector.extract_strided_slice %7 {offsets = [0, 1, 0], sizes = [1, 10, 32], strides = [1, 1, 1]} : vector<1x16x32xf32> to vector<1x10x32xf32>
    %74 = arith.addf %72, %73 : vector<1x10x32xf32>
    %75 = vector.extract_strided_slice %7 {offsets = [0, 2, 0], sizes = [1, 10, 32], strides = [1, 1, 1]} : vector<1x16x32xf32> to vector<1x10x32xf32>
    %76 = arith.addf %74, %75 : vector<1x10x32xf32>
    %77 = vector.extract_strided_slice %7 {offsets = [0, 3, 0], sizes = [1, 10, 32], strides = [1, 1, 1]} : vector<1x16x32xf32> to vector<1x10x32xf32>
    %78 = arith.addf %76, %77 : vector<1x10x32xf32>
    %79 = vector.extract_strided_slice %7 {offsets = [0, 4, 0], sizes = [1, 10, 32], strides = [1, 1, 1]} : vector<1x16x32xf32> to vector<1x10x32xf32>
    %80 = arith.addf %78, %79 : vector<1x10x32xf32>
    %81 = vector.extract_strided_slice %7 {offsets = [0, 5, 0], sizes = [1, 10, 32], strides = [1, 1, 1]} : vector<1x16x32xf32> to vector<1x10x32xf32>
    %82 = arith.addf %80, %81 : vector<1x10x32xf32>
    %83 = vector.extract_strided_slice %7 {offsets = [0, 6, 0], sizes = [1, 10, 32], strides = [1, 1, 1]} : vector<1x16x32xf32> to vector<1x10x32xf32>
    %84 = arith.addf %82, %83 : vector<1x10x32xf32>
    %85 = vector.shape_cast %84 : vector<1x10x32xf32> to vector<10x32xf32>
    %cst_16 = arith.constant dense<0.000000e+00> : vector<10x20xf32>
    %86 = tpu.matmul %85, %2, %cst_16 {dimension_numbers = #tpu.dot_dimension_numbers<[1], [0], [0], [1], [0, 0, 1, 1], [], []>} : vector<10x32xf32>, vector<32x20xf32>, vector<10x20xf32> -> vector<10x20xf32>
    %87 = vector.shape_cast %86 : vector<10x20xf32> to vector<1x10x20xf32>
    %88 = arith.mulf %23, %39 : vector<1x10x20xf32>
    %89 = arith.mulf %23, %23 : vector<1x10x20xf32>
    %90 = arith.mulf %39, %39 : vector<1x10x20xf32>
    %cst_17 = arith.constant 2.000000e+00 : f32
    %91 = vector.broadcast %cst_17 : f32 to vector<1x10x20xf32>
    %92 = arith.mulf %91, %88 : vector<1x10x20xf32>
    %93 = vector.broadcast %3 : vector<1x1x20xf32> to vector<1x10x20xf32>
    %94 = arith.addf %92, %93 : vector<1x10x20xf32>
    %cst_18 = arith.constant 4.900000e+01 : f32
    %95 = vector.broadcast %cst_18 : f32 to vector<1x10x20xf32>
    %96 = arith.mulf %95, %87 : vector<1x10x20xf32>
    %97 = arith.subf %96, %88 : vector<1x10x20xf32>
    %cst_19 = arith.constant 2.04166675 : f32
    %98 = vector.broadcast %cst_19 : f32 to vector<1x10x20xf32>
    %99 = arith.mulf %98, %97 : vector<1x10x20xf32>
    %100 = vector.broadcast %4 : vector<1x1x20xf32> to vector<1x10x20xf32>
    %101 = arith.addf %99, %100 : vector<1x10x20xf32>
    %102 = arith.addf %89, %90 : vector<1x10x20xf32>
    %103 = vector.broadcast %3 : vector<1x1x20xf32> to vector<1x10x20xf32>
    %104 = arith.addf %102, %103 : vector<1x10x20xf32>
    %105 = arith.addf %55, %71 : vector<1x10x20xf32>
    %cst_20 = arith.constant 4.900000e+01 : f32
    %106 = vector.broadcast %cst_20 : f32 to vector<1x10x20xf32>
    %107 = arith.mulf %106, %105 : vector<1x10x20xf32>
    %108 = arith.subf %107, %89 : vector<1x10x20xf32>
    %109 = arith.subf %108, %90 : vector<1x10x20xf32>
    %cst_21 = arith.constant 1.02083337 : f32
    %110 = vector.broadcast %cst_21 : f32 to vector<1x10x20xf32>
    %111 = arith.mulf %110, %109 : vector<1x10x20xf32>
    %112 = vector.broadcast %4 : vector<1x1x20xf32> to vector<1x10x20xf32>
    %113 = arith.addf %111, %112 : vector<1x10x20xf32>
    %114 = arith.mulf %104, %113 : vector<1x10x20xf32>
    %115 = tpu.reciprocal %114 {approx = true} : vector<1x10x20xf32> -> vector<1x10x20xf32>
    %116 = arith.mulf %114, %115 : vector<1x10x20xf32>
    %cst_22 = arith.constant 2.000000e+00 : f32
    %117 = vector.broadcast %cst_22 : f32 to vector<1x10x20xf32>
    %118 = arith.subf %117, %116 : vector<1x10x20xf32>
    %119 = arith.mulf %115, %118 : vector<1x10x20xf32>
    %120 = arith.mulf %94, %101 : vector<1x10x20xf32>
    %121 = arith.mulf %120, %119 : vector<1x10x20xf32>
    %cst_23 = arith.constant dense<0.000000e+00> : vector<1x20xf32>
    %122 = vector.multi_reduction <add>, %121, %cst_23 [1] : vector<1x10x20xf32> to vector<1x20xf32>
    %123 = vector.shape_cast %122 : vector<1x20xf32> to vector<1x1x20xf32>
    %c0_24 = arith.constant 0 : index
    %c0_25 = arith.constant 0 : index
    %c0_26 = arith.constant 0 : index
    %124 = vector.load %arg6[%c0_24, %c0_25, %c0_26] : memref<1x1x20xf32, #tpu.memory_space<vmem>>, vector<1x1x20xf32>
    tpu.vector_store %arg6[%c0_24, %c0_25, %c0_26], %123 {strides = array<i32>} : memref<1x1x20xf32, #tpu.memory_space<vmem>>, vector<1x1x20xf32>,
    return
  }
  func.func @transform_0(%arg0: i32) -> (i32, i32, i32) {
    %c0_i32 = arith.constant 0 : i32
    %c0_i32_0 = arith.constant 0 : i32
    %c0_i32_1 = arith.constant 0 : i32
    return %arg0, %c0_i32, %c0_i32_0 : i32, i32, i32
  }
  func.func @transform_1(%arg0: i32) -> (i32, i32, i32) {
    %c0_i32 = arith.constant 0 : i32
    %c0_i32_0 = arith.constant 0 : i32
    %c0_i32_1 = arith.constant 0 : i32
    return %arg0, %c0_i32, %c0_i32_0 : i32, i32, i32
  }
  func.func @transform_2(%arg0: i32) -> (i32, i32) {
    %c0_i32 = arith.constant 0 : i32
    %c0_i32_0 = arith.constant 0 : i32
    %c0_i32_1 = arith.constant 0 : i32
    return %c0_i32, %c0_i32_0 : i32, i32
  }
  func.func @transform_3(%arg0: i32) -> (i32, i32, i32) {
    %c0_i32 = arith.constant 0 : i32
    %c0_i32_0 = arith.constant 0 : i32
    %c0_i32_1 = arith.constant 0 : i32
    return %arg0, %c0_i32, %c0_i32_0 : i32, i32, i32
  }
  func.func @transform_4(%arg0: i32) -> (i32, i32, i32) {
    %c0_i32 = arith.constant 0 : i32
    %c0_i32_0 = arith.constant 0 : i32
    %c0_i32_1 = arith.constant 0 : i32
    return %arg0, %c0_i32, %c0_i32_0 : i32, i32, i32
  }
  func.func @transform_5(%arg0: i32) -> (i32, i32, i32) {
    %c0_i32 = arith.constant 0 : i32
    %c0_i32_0 = arith.constant 0 : i32
    %c0_i32_1 = arith.constant 0 : i32
    return %arg0, %c0_i32, %c0_i32_0 : i32, i32, i32
  }
}

</mosaic_0001>

<llo_original>
// kernel: tpu_custom_call.1
$region0: #{tpu_custom_call.1}
  #allocation0 [shape = 'u32[]', space=smem, size = 0x4, offset = 0x4, fixed_abs, tag = 'smem constant byte address 0x4 - core index']
  #allocation1 [shape = 'u32[144,128]{1,0:T(1,128)}', space=vmem, size = 0x12000, scoped, tag = 'internal scratch']
  %s0 = inlined_call_operand.vmem [shape: f32[1,16,32], index: 0, kind: input, shape index: {}]
  %s1 = inlined_call_operand.vmem [shape: f32[1,16,32], index: 1, kind: input, shape index: {}]
  %s2 = inlined_call_operand.vmem [shape: f32[32,20], index: 2, kind: input, shape index: {}]
  %s3 = inlined_call_operand.vmem [shape: f32[1,1,20], index: 3, kind: input, shape index: {}]
  %s4 = inlined_call_operand.vmem [shape: f32[1,1,20], index: 4, kind: input, shape index: {}]
  %s5 = inlined_call_operand.hbm [shape: f32[1,1,20], index: 5, kind: output, shape index: {}]
  %s6 = sld [smem:[#allocation0]]
  $region30: #{tpu_custom_call.1} parent=0
    _
  %s8 = ssub.s32 1, %s6
  %s9 = scalar_select 0, %s8, %s6
  $region1: #{tpu_custom_call.1} parent=0
    #allocation2 [shape = 'u8[512]{0}', space=vmem, size = 0x400, scoped, tag = 'output window, operand 0, single buffered']
    #allocation3 [shape = 's32[1]{0}', space=sflag, size = 0x4, scoped, tag = 'scoped memory for tpu_custom_call.1']
    %10 = vsyncpa [#allocation3], 0
    // Predicated region
    $region2: #{tpu_custom_call.1} parent=1 // pred_check
      _
    $region3: #{tpu_custom_call.1} parent=1 // pred_check_branch
      %12 = sbr.rel (0) target = $region5
    $region4: #{tpu_custom_call.1} parent=1 // pred_region
      _
    $region5: #{tpu_custom_call.1} parent=1 // pred_fallthru
      _
    // Predicated region
    $region6: #{tpu_custom_call.1} parent=1 // pred_check
      _
    $region7: #{tpu_custom_call.1} parent=1 // pred_check_branch
      %14 = sbr.rel (0) target = $region9
    $region8: #{tpu_custom_call.1} parent=1 // pred_region
      _
    $region9: #{tpu_custom_call.1} parent=1 // pred_fallthru
      _
    // Predicated region
    $region10: #{tpu_custom_call.1} parent=1 // pred_check
      _
    $region11: #{tpu_custom_call.1} parent=1 // pred_check_branch
      %16 = sbr.rel (0) target = $region13
    $region12: #{tpu_custom_call.1} parent=1 // pred_region
      _
    $region13: #{tpu_custom_call.1} parent=1 // pred_fallthru
      _
    // Predicated region
    $region14: #{tpu_custom_call.1} parent=1 // pred_check
      _
    $region15: #{tpu_custom_call.1} parent=1 // pred_check_branch
      %18 = sbr.rel (0) target = $region17
    $region16: #{tpu_custom_call.1} parent=1 // pred_region
      _
    $region17: #{tpu_custom_call.1} parent=1 // pred_fallthru
      _
    // Predicated region
    $region18: #{tpu_custom_call.1} parent=1 // pred_check
      _
    $region19: #{tpu_custom_call.1} parent=1 // pred_check_branch
      %20 = sbr.rel (0) target = $region21
    $region20: #{tpu_custom_call.1} parent=1 // pred_region
      _
    $region21: #{tpu_custom_call.1} parent=1 // pred_fallthru
      _
    %v21 = vld [vmem:[%s0] sm:$0xff]
    %v22 = vld [vmem:[%s0 + $0x8] sm:$0xff]
    %v23 = vld [vmem:[%s1] sm:$0xff]
    %v24 = vld [vmem:[%s1 + $0x8] sm:$0xff]
    %v25 = vld [vmem:[%s2] sm:$0xff]
    %v26 = vld [vmem:[%s2 + $0x8] sm:$0xff]
    %v27 = vld [vmem:[%s2 + $0x10] sm:$0xff]
    %v28 = vld [vmem:[%s2 + $0x18] sm:$0xff]
    %v29 = vld [vmem:[%s3] sm:$0x1]
    %v30 = vld [vmem:[%s4] sm:$0x1]
    %v31 = vmul.f32 %v21, %v21
    %v32 = vmul.f32 %v22, %v22
    %v33 = vmul.f32 %v23, %v23
    %v34 = vmul.f32 %v24, %v24
    %v35 = vmul.f32 %v21, %v23
    %v36 = vmul.f32 %v22, %v24
    %vm39 = vcmask 1046528
    %v40 = vrot.slane %v21, 1
    %v41 = vrot.slane %v22, 1
    %v42 = vsel %vm39, %v40, %v41
    %v45 = vadd.f32 %v21, %v42
    %v46 = vadd.f32 %v22, %v41
    %vm47 = vcmask 1045504
    %v48 = vrot.slane %v21, 2
    %v49 = vrot.slane %v22, 2
    %v50 = vsel %vm47, %v48, %v49
    %v53 = vadd.f32 %v45, %v50
    %v54 = vadd.f32 %v46, %v49
    %vm55 = vcmask 1044480
    %v56 = vrot.slane %v21, 3
    %v57 = vrot.slane %v22, 3
    %v58 = vsel %vm55, %v56, %v57
    %v61 = vadd.f32 %v53, %v58
    %v62 = vadd.f32 %v54, %v57
    %vm63 = vcmask 1043456
    %v64 = vrot.slane %v21, 4
    %v65 = vrot.slane %v22, 4
    %v66 = vsel %vm63, %v64, %v65
    %v69 = vadd.f32 %v61, %v66
    %v70 = vadd.f32 %v62, %v65
    %vm71 = vcmask 1042432
    %v72 = vrot.slane %v21, 5
    %v73 = vrot.slane %v22, 5
    %v74 = vsel %vm71, %v72, %v73
    %v77 = vadd.f32 %v69, %v74
    %v78 = vadd.f32 %v70, %v73
    %vm79 = vcmask 1041408
    %v80 = vrot.slane %v21, 6
    %v81 = vrot.slane %v22, 6
    %v82 = vsel %vm79, %v80, %v81
    %v85 = vadd.f32 %v77, %v82
    %v86 = vadd.f32 %v78, %v81
    %vm87 = vcmask 261120
    %v89 = vsel %vm87, %v85, 0
    %v92 = vsel %vm87, %v86, 0
    %94 = vmatprep.subr.mxu0 0.0
    %95 = vmatpush1.msra.mxu0 %v25
    %96 = vmatprep.subr.mxu0 0.0
    %97 = vmatpush1.msra.mxu0 %v26
    %98 = vmatprep.subr.mxu0 0.0
    %99 = vmatpush1.msra.mxu0 %v27
    %100 = vmatprep.subr.mxu0 0.0
    %101 = vmatpush1.msra.mxu0 %v28
    %102 = vmatprep.subr.mxu0 0.0
    %103 = vmatpush1.msra.mxu0 0.0
    %104 = vmatprep.subr.mxu0 0.0
    %105 = vmatpush1.msra.mxu0 0.0
    %106 = vmatprep.subr.mxu0 0.0
    %107 = vmatpush1.msra.mxu0 0.0
    %108 = vmatprep.subr.mxu0 0.0
    %109 = vmatpush1.msra.mxu0 0.0
    %110 = vmatprep.subr.mxu0 0.0
    %111 = vmatpush1.msra.mxu0 0.0
    %112 = vmatprep.subr.mxu0 0.0
    %113 = vmatpush1.msra.mxu0 0.0
    %114 = vmatprep.subr.mxu0 0.0
    %115 = vmatpush1.msra.mxu0 0.0
    %116 = vmatprep.subr.mxu0 0.0
    %117 = vmatpush1.msra.mxu0 0.0
    %118 = vmatprep.subr.mxu0 0.0
    %119 = vmatpush1.msra.mxu0 0.0
    %120 = vmatprep.subr.mxu0 0.0
    %121 = vmatpush1.msra.mxu0 0.0
    %122 = vmatprep.subr.mxu0 0.0
    %123 = vmatpush1.msra.mxu0 0.0
    %124 = vmatprep.subr.mxu0 0.0
    %125 = vmatpush1.msra.mxu0 0.0
    %126 = vmatprep.subr.mxu0 0.0
    %127 = vmatpush1.msra.mxu0 0.0
    %128 = vmatprep.subr.mxu0 0.0
    %129 = vmatpush1.msra.mxu0 0.0
    %130 = vmatprep.subr.mxu0 0.0
    %131 = vmatpush1.msra.mxu0 0.0
    %132 = vmatprep.subr.mxu0 0.0
    %133 = vmatpush1.msra.mxu0 0.0
    %134 = vmatprep.subr.mxu0 0.0
    %135 = vmatpush1.msra.mxu0 0.0
    %136 = vmatprep.subr.mxu0 0.0
    %137 = vmatpush1.msra.mxu0 0.0
    %138 = vmatprep.subr.mxu0 0.0
    %139 = vmatpush1.msra.mxu0 0.0
    %140 = vmatprep.subr.mxu0 0.0
    %141 = vmatpush1.msra.mxu0 0.0
    %142 = vmatprep.subr.mxu0 0.0
    %143 = vmatpush1.msra.mxu0 0.0
    %144 = vmatprep.subr.mxu0 0.0
    %145 = vmatpush1.msra.mxu0 0.0
    %146 = vmatprep.subr.mxu0 0.0
    %147 = vmatpush1.msra.mxu0 0.0
    %148 = vmatprep.subr.mxu0 0.0
    %149 = vmatpush1.msra.mxu0 0.0
    %150 = vmatprep.subr.mxu0 0.0
    %151 = vmatpush1.msra.mxu0 0.0
    %152 = vmatprep.subr.mxu0 0.0
    %153 = vmatpush1.msra.mxu0 0.0
    %154 = vmatprep.subr.mxu0 0.0
    %155 = vmatpush1.msra.mxu0 0.0
    %156 = vmatprep.subr.mxu0 0.0
    %157 = vmatpush1.msra.mxu0 0.0
    %158 = vmatprep.mubr.f32.mxu0 0.0
    %159 = vmatmul.mubr.f32.gmra.mrb[0].mxu0 %v89
    %v160 = vpop.f32.mrb[0].mxu0
    %v161 = vadd.f32 0.0, %v160
    %v162 = vpop.f32.mrb[0].mxu0
    %163 = vmatprep.mubr.f32.mxu0 0.0
    %164 = vmatmul.mubr.f32.gmra.mrb[0].mxu0 %v92
    %v165 = vpop.f32.mrb[0].mxu0
    %v166 = vadd.f32 0.0, %v165
    %v167 = vpop.f32.mrb[0].mxu0
    %168 = vdwg.mxu0
    %v171 = vrot.slane %v23, 1
    %v172 = vrot.slane %v24, 1
    %v173 = vsel %vm39, %v171, %v172
    %v176 = vadd.f32 %v23, %v173
    %v177 = vadd.f32 %v24, %v172
    %v178 = vrot.slane %v23, 2
    %v179 = vrot.slane %v24, 2
    %v180 = vsel %vm47, %v178, %v179
    %v183 = vadd.f32 %v176, %v180
    %v184 = vadd.f32 %v177, %v179
    %v185 = vrot.slane %v23, 3
    %v186 = vrot.slane %v24, 3
    %v187 = vsel %vm55, %v185, %v186
    %v190 = vadd.f32 %v183, %v187
    %v191 = vadd.f32 %v184, %v186
    %v192 = vrot.slane %v23, 4
    %v193 = vrot.slane %v24, 4
    %v194 = vsel %vm63, %v192, %v193
    %v197 = vadd.f32 %v190, %v194
    %v198 = vadd.f32 %v191, %v193
    %v199 = vrot.slane %v23, 5
    %v200 = vrot.slane %v24, 5
    %v201 = vsel %vm71, %v199, %v200
    %v204 = vadd.f32 %v197, %v201
    %v205 = vadd.f32 %v198, %v200
    %v206 = vrot.slane %v23, 6
    %v207 = vrot.slane %v24, 6
    %v208 = vsel %vm79, %v206, %v207
    %v211 = vadd.f32 %v204, %v208
    %v212 = vadd.f32 %v205, %v207
    %v214 = vsel %vm87, %v211, 0
    %v217 = vsel %vm87, %v212, 0
    %219 = vmatprep.subr.mxu0 0.0
    %220 = vmatpush1.msra.mxu0 %v25
    %221 = vmatprep.subr.mxu0 0.0
    %222 = vmatpush1.msra.mxu0 %v26
    %223 = vmatprep.subr.mxu0 0.0
    %224 = vmatpush1.msra.mxu0 %v27
    %225 = vmatprep.subr.mxu0 0.0
    %226 = vmatpush1.msra.mxu0 %v28
    %227 = vmatprep.subr.mxu0 0.0
    %228 = vmatpush1.msra.mxu0 0.0
    %229 = vmatprep.subr.mxu0 0.0
    %230 = vmatpush1.msra.mxu0 0.0
    %231 = vmatprep.subr.mxu0 0.0
    %232 = vmatpush1.msra.mxu0 0.0
    %233 = vmatprep.subr.mxu0 0.0
    %234 = vmatpush1.msra.mxu0 0.0
    %235 = vmatprep.subr.mxu0 0.0
    %236 = vmatpush1.msra.mxu0 0.0
    %237 = vmatprep.subr.mxu0 0.0
    %238 = vmatpush1.msra.mxu0 0.0
    %239 = vmatprep.subr.mxu0 0.0
    %240 = vmatpush1.msra.mxu0 0.0
    %241 = vmatprep.subr.mxu0 0.0
    %242 = vmatpush1.msra.mxu0 0.0
    %243 = vmatprep.subr.mxu0 0.0
    %244 = vmatpush1.msra.mxu0 0.0
    %245 = vmatprep.subr.mxu0 0.0
    %246 = vmatpush1.msra.mxu0 0.0
    %247 = vmatprep.subr.mxu0 0.0
    %248 = vmatpush1.msra.mxu0 0.0
    %249 = vmatprep.subr.mxu0 0.0
    %250 = vmatpush1.msra.mxu0 0.0
    %251 = vmatprep.subr.mxu0 0.0
    %252 = vmatpush1.msra.mxu0 0.0
    %253 = vmatprep.subr.mxu0 0.0
    %254 = vmatpush1.msra.mxu0 0.0
    %255 = vmatprep.subr.mxu0 0.0
    %256 = vmatpush1.msra.mxu0 0.0
    %257 = vmatprep.subr.mxu0 0.0
    %258 = vmatpush1.msra.mxu0 0.0
    %259 = vmatprep.subr.mxu0 0.0
    %260 = vmatpush1.msra.mxu0 0.0
    %261 = vmatprep.subr.mxu0 0.0
    %262 = vmatpush1.msra.mxu0 0.0
    %263 = vmatprep.subr.mxu0 0.0
    %264 = vmatpush1.msra.mxu0 0.0
    %265 = vmatprep.subr.mxu0 0.0
    %266 = vmatpush1.msra.mxu0 0.0
    %267 = vmatprep.subr.mxu0 0.0
    %268 = vmatpush1.msra.mxu0 0.0
    %269 = vmatprep.subr.mxu0 0.0
    %270 = vmatpush1.msra.mxu0 0.0
    %271 = vmatprep.subr.mxu0 0.0
    %272 = vmatpush1.msra.mxu0 0.0
    %273 = vmatprep.subr.mxu0 0.0
    %274 = vmatpush1.msra.mxu0 0.0
    %275 = vmatprep.subr.mxu0 0.0
    %276 = vmatpush1.msra.mxu0 0.0
    %277 = vmatprep.subr.mxu0 0.0
    %278 = vmatpush1.msra.mxu0 0.0
    %279 = vmatprep.subr.mxu0 0.0
    %280 = vmatpush1.msra.mxu0 0.0
    %281 = vmatprep.subr.mxu0 0.0
    %282 = vmatpush1.msra.mxu0 0.0
    %283 = vmatprep.mubr.f32.mxu0 0.0
    %284 = vmatmul.mubr.f32.gmra.mrb[0].mxu0 %v214
    %v285 = vpop.f32.mrb[0].mxu0
    %v286 = vadd.f32 0.0, %v285
    %v287 = vpop.f32.mrb[0].mxu0
    %288 = vmatprep.mubr.f32.mxu0 0.0
    %289 = vmatmul.mubr.f32.gmra.mrb[0].mxu0 %v217
    %v290 = vpop.f32.mrb[0].mxu0
    %v291 = vadd.f32 0.0, %v290
    %v292 = vpop.f32.mrb[0].mxu0
    %293 = vdwg.mxu0
    %v296 = vrot.slane %v31, 1
    %v297 = vrot.slane %v32, 1
    %v298 = vsel %vm39, %v296, %v297
    %v301 = vadd.f32 %v31, %v298
    %v302 = vadd.f32 %v32, %v297
    %v303 = vrot.slane %v31, 2
    %v304 = vrot.slane %v32, 2
    %v305 = vsel %vm47, %v303, %v304
    %v308 = vadd.f32 %v301, %v305
    %v309 = vadd.f32 %v302, %v304
    %v310 = vrot.slane %v31, 3
    %v311 = vrot.slane %v32, 3
    %v312 = vsel %vm55, %v310, %v311
    %v315 = vadd.f32 %v308, %v312
    %v316 = vadd.f32 %v309, %v311
    %v317 = vrot.slane %v31, 4
    %v318 = vrot.slane %v32, 4
    %v319 = vsel %vm63, %v317, %v318
    %v322 = vadd.f32 %v315, %v319
    %v323 = vadd.f32 %v316, %v318
    %v324 = vrot.slane %v31, 5
    %v325 = vrot.slane %v32, 5
    %v326 = vsel %vm71, %v324, %v325
    %v329 = vadd.f32 %v322, %v326
    %v330 = vadd.f32 %v323, %v325
    %v331 = vrot.slane %v31, 6
    %v332 = vrot.slane %v32, 6
    %v333 = vsel %vm79, %v331, %v332
    %v336 = vadd.f32 %v329, %v333
    %v337 = vadd.f32 %v330, %v332
    %v339 = vsel %vm87, %v336, 0
    %v342 = vsel %vm87, %v337, 0
    %344 = vmatprep.subr.mxu0 0.0
    %345 = vmatpush1.msra.mxu0 %v25
    %346 = vmatprep.subr.mxu0 0.0
    %347 = vmatpush1.msra.mxu0 %v26
    %348 = vmatprep.subr.mxu0 0.0
    %349 = vmatpush1.msra.mxu0 %v27
    %350 = vmatprep.subr.mxu0 0.0
    %351 = vmatpush1.msra.mxu0 %v28
    %352 = vmatprep.subr.mxu0 0.0
    %353 = vmatpush1.msra.mxu0 0.0
    %354 = vmatprep.subr.mxu0 0.0
    %355 = vmatpush1.msra.mxu0 0.0
    %356 = vmatprep.subr.mxu0 0.0
    %357 = vmatpush1.msra.mxu0 0.0
    %358 = vmatprep.subr.mxu0 0.0
    %359 = vmatpush1.msra.mxu0 0.0
    %360 = vmatprep.subr.mxu0 0.0
    %361 = vmatpush1.msra.mxu0 0.0
    %362 = vmatprep.subr.mxu0 0.0
    %363 = vmatpush1.msra.mxu0 0.0
    %364 = vmatprep.subr.mxu0 0.0
    %365 = vmatpush1.msra.mxu0 0.0
    %366 = vmatprep.subr.mxu0 0.0
    %367 = vmatpush1.msra.mxu0 0.0
    %368 = vmatprep.subr.mxu0 0.0
    %369 = vmatpush1.msra.mxu0 0.0
    %370 = vmatprep.subr.mxu0 0.0
    %371 = vmatpush1.msra.mxu0 0.0
    %372 = vmatprep.subr.mxu0 0.0
    %373 = vmatpush1.msra.mxu0 0.0
    %374 = vmatprep.subr.mxu0 0.0
    %375 = vmatpush1.msra.mxu0 0.0
    %376 = vmatprep.subr.mxu0 0.0
    %377 = vmatpush1.msra.mxu0 0.0
    %378 = vmatprep.subr.mxu0 0.0
    %379 = vmatpush1.msra.mxu0 0.0
    %380 = vmatprep.subr.mxu0 0.0
    %381 = vmatpush1.msra.mxu0 0.0
    %382 = vmatprep.subr.mxu0 0.0
    %383 = vmatpush1.msra.mxu0 0.0
    %384 = vmatprep.subr.mxu0 0.0
    %385 = vmatpush1.msra.mxu0 0.0
    %386 = vmatprep.subr.mxu0 0.0
    %387 = vmatpush1.msra.mxu0 0.0
    %388 = vmatprep.subr.mxu0 0.0
    %389 = vmatpush1.msra.mxu0 0.0
    %390 = vmatprep.subr.mxu0 0.0
    %391 = vmatpush1.msra.mxu0 0.0
    %392 = vmatprep.subr.mxu0 0.0
    %393 = vmatpush1.msra.mxu0 0.0
    %394 = vmatprep.subr.mxu0 0.0
    %395 = vmatpush1.msra.mxu0 0.0
    %396 = vmatprep.subr.mxu0 0.0
    %397 = vmatpush1.msra.mxu0 0.0
    %398 = vmatprep.subr.mxu0 0.0
    %399 = vmatpush1.msra.mxu0 0.0
    %400 = vmatprep.subr.mxu0 0.0
    %401 = vmatpush1.msra.mxu0 0.0
    %402 = vmatprep.subr.mxu0 0.0
    %403 = vmatpush1.msra.mxu0 0.0
    %404 = vmatprep.subr.mxu0 0.0
    %405 = vmatpush1.msra.mxu0 0.0
    %406 = vmatprep.subr.mxu0 0.0
    %407 = vmatpush1.msra.mxu0 0.0
    %408 = vmatprep.mubr.f32.mxu0 0.0
    %409 = vmatmul.mubr.f32.gmra.mrb[0].mxu0 %v339
    %v410 = vpop.f32.mrb[0].mxu0
    %v411 = vadd.f32 0.0, %v410
    %v412 = vpop.f32.mrb[0].mxu0
    %413 = vmatprep.mubr.f32.mxu0 0.0
    %414 = vmatmul.mubr.f32.gmra.mrb[0].mxu0 %v342
    %v415 = vpop.f32.mrb[0].mxu0
    %v416 = vadd.f32 0.0, %v415
    %v417 = vpop.f32.mrb[0].mxu0
    %418 = vdwg.mxu0
    %v421 = vrot.slane %v33, 1
    %v422 = vrot.slane %v34, 1
    %v423 = vsel %vm39, %v421, %v422
    %v426 = vadd.f32 %v33, %v423
    %v427 = vadd.f32 %v34, %v422
    %v428 = vrot.slane %v33, 2
    %v429 = vrot.slane %v34, 2
    %v430 = vsel %vm47, %v428, %v429
    %v433 = vadd.f32 %v426, %v430
    %v434 = vadd.f32 %v427, %v429
    %v435 = vrot.slane %v33, 3
    %v436 = vrot.slane %v34, 3
    %v437 = vsel %vm55, %v435, %v436
    %v440 = vadd.f32 %v433, %v437
    %v441 = vadd.f32 %v434, %v436
    %v442 = vrot.slane %v33, 4
    %v443 = vrot.slane %v34, 4
    %v444 = vsel %vm63, %v442, %v443
    %v447 = vadd.f32 %v440, %v444
    %v448 = vadd.f32 %v441, %v443
    %v449 = vrot.slane %v33, 5
    %v450 = vrot.slane %v34, 5
    %v451 = vsel %vm71, %v449, %v450
    %v454 = vadd.f32 %v447, %v451
    %v455 = vadd.f32 %v448, %v450
    %v456 = vrot.slane %v33, 6
    %v457 = vrot.slane %v34, 6
    %v458 = vsel %vm79, %v456, %v457
    %v461 = vadd.f32 %v454, %v458
    %v462 = vadd.f32 %v455, %v457
    %v464 = vsel %vm87, %v461, 0
    %v467 = vsel %vm87, %v462, 0
    %469 = vmatprep.subr.mxu0 0.0
    %470 = vmatpush1.msra.mxu0 %v25
    %471 = vmatprep.subr.mxu0 0.0
    %472 = vmatpush1.msra.mxu0 %v26
    %473 = vmatprep.subr.mxu0 0.0
    %474 = vmatpush1.msra.mxu0 %v27
    %475 = vmatprep.subr.mxu0 0.0
    %476 = vmatpush1.msra.mxu0 %v28
    %477 = vmatprep.subr.mxu0 0.0
    %478 = vmatpush1.msra.mxu0 0.0
    %479 = vmatprep.subr.mxu0 0.0
    %480 = vmatpush1.msra.mxu0 0.0
    %481 = vmatprep.subr.mxu0 0.0
    %482 = vmatpush1.msra.mxu0 0.0
    %483 = vmatprep.subr.mxu0 0.0
    %484 = vmatpush1.msra.mxu0 0.0
    %485 = vmatprep.subr.mxu0 0.0
    %486 = vmatpush1.msra.mxu0 0.0
    %487 = vmatprep.subr.mxu0 0.0
    %488 = vmatpush1.msra.mxu0 0.0
    %489 = vmatprep.subr.mxu0 0.0
    %490 = vmatpush1.msra.mxu0 0.0
    %491 = vmatprep.subr.mxu0 0.0
    %492 = vmatpush1.msra.mxu0 0.0
    %493 = vmatprep.subr.mxu0 0.0
    %494 = vmatpush1.msra.mxu0 0.0
    %495 = vmatprep.subr.mxu0 0.0
    %496 = vmatpush1.msra.mxu0 0.0
    %497 = vmatprep.subr.mxu0 0.0
    %498 = vmatpush1.msra.mxu0 0.0
    %499 = vmatprep.subr.mxu0 0.0
    %500 = vmatpush1.msra.mxu0 0.0
    %501 = vmatprep.subr.mxu0 0.0
    %502 = vmatpush1.msra.mxu0 0.0
    %503 = vmatprep.subr.mxu0 0.0
    %504 = vmatpush1.msra.mxu0 0.0
    %505 = vmatprep.subr.mxu0 0.0
    %506 = vmatpush1.msra.mxu0 0.0
    %507 = vmatprep.subr.mxu0 0.0
    %508 = vmatpush1.msra.mxu0 0.0
    %509 = vmatprep.subr.mxu0 0.0
    %510 = vmatpush1.msra.mxu0 0.0
    %511 = vmatprep.subr.mxu0 0.0
    %512 = vmatpush1.msra.mxu0 0.0
    %513 = vmatprep.subr.mxu0 0.0
    %514 = vmatpush1.msra.mxu0 0.0
    %515 = vmatprep.subr.mxu0 0.0
    %516 = vmatpush1.msra.mxu0 0.0
    %517 = vmatprep.subr.mxu0 0.0
    %518 = vmatpush1.msra.mxu0 0.0
    %519 = vmatprep.subr.mxu0 0.0
    %520 = vmatpush1.msra.mxu0 0.0
    %521 = vmatprep.subr.mxu0 0.0
    %522 = vmatpush1.msra.mxu0 0.0
    %523 = vmatprep.subr.mxu0 0.0
    %524 = vmatpush1.msra.mxu0 0.0
    %525 = vmatprep.subr.mxu0 0.0
    %526 = vmatpush1.msra.mxu0 0.0
    %527 = vmatprep.subr.mxu0 0.0
    %528 = vmatpush1.msra.mxu0 0.0
    %529 = vmatprep.subr.mxu0 0.0
    %530 = vmatpush1.msra.mxu0 0.0
    %531 = vmatprep.subr.mxu0 0.0
    %532 = vmatpush1.msra.mxu0 0.0
    %533 = vmatprep.mubr.f32.mxu0 0.0
    %534 = vmatmul.mubr.f32.gmra.mrb[0].mxu0 %v464
    %v535 = vpop.f32.mrb[0].mxu0
    %v536 = vadd.f32 0.0, %v535
    %v537 = vpop.f32.mrb[0].mxu0
    %538 = vmatprep.mubr.f32.mxu0 0.0
    %539 = vmatmul.mubr.f32.gmra.mrb[0].mxu0 %v467
    %v540 = vpop.f32.mrb[0].mxu0
    %v541 = vadd.f32 0.0, %v540
    %v542 = vpop.f32.mrb[0].mxu0
    %543 = vdwg.mxu0
    %v546 = vrot.slane %v35, 1
    %v547 = vrot.slane %v36, 1
    %v548 = vsel %vm39, %v546, %v547
    %v551 = vadd.f32 %v35, %v548
    %v552 = vadd.f32 %v36, %v547
    %v553 = vrot.slane %v35, 2
    %v554 = vrot.slane %v36, 2
    %v555 = vsel %vm47, %v553, %v554
    %v558 = vadd.f32 %v551, %v555
    %v559 = vadd.f32 %v552, %v554
    %v560 = vrot.slane %v35, 3
    %v561 = vrot.slane %v36, 3
    %v562 = vsel %vm55, %v560, %v561
    %v565 = vadd.f32 %v558, %v562
    %v566 = vadd.f32 %v559, %v561
    %v567 = vrot.slane %v35, 4
    %v568 = vrot.slane %v36, 4
    %v569 = vsel %vm63, %v567, %v568
    %v572 = vadd.f32 %v565, %v569
    %v573 = vadd.f32 %v566, %v568
    %v574 = vrot.slane %v35, 5
    %v575 = vrot.slane %v36, 5
    %v576 = vsel %vm71, %v574, %v575
    %v579 = vadd.f32 %v572, %v576
    %v580 = vadd.f32 %v573, %v575
    %v581 = vrot.slane %v35, 6
    %v582 = vrot.slane %v36, 6
    %v583 = vsel %vm79, %v581, %v582
    %v586 = vadd.f32 %v579, %v583
    %v587 = vadd.f32 %v580, %v582
    %v589 = vsel %vm87, %v586, 0
    %v592 = vsel %vm87, %v587, 0
    %594 = vmatprep.subr.mxu0 0.0
    %595 = vmatpush1.msra.mxu0 %v25
    %596 = vmatprep.subr.mxu0 0.0
    %597 = vmatpush1.msra.mxu0 %v26
    %598 = vmatprep.subr.mxu0 0.0
    %599 = vmatpush1.msra.mxu0 %v27
    %600 = vmatprep.subr.mxu0 0.0
    %601 = vmatpush1.msra.mxu0 %v28
    %602 = vmatprep.subr.mxu0 0.0
    %603 = vmatpush1.msra.mxu0 0.0
    %604 = vmatprep.subr.mxu0 0.0
    %605 = vmatpush1.msra.mxu0 0.0
    %606 = vmatprep.subr.mxu0 0.0
    %607 = vmatpush1.msra.mxu0 0.0
    %608 = vmatprep.subr.mxu0 0.0
    %609 = vmatpush1.msra.mxu0 0.0
    %610 = vmatprep.subr.mxu0 0.0
    %611 = vmatpush1.msra.mxu0 0.0
    %612 = vmatprep.subr.mxu0 0.0
    %613 = vmatpush1.msra.mxu0 0.0
    %614 = vmatprep.subr.mxu0 0.0
    %615 = vmatpush1.msra.mxu0 0.0
    %616 = vmatprep.subr.mxu0 0.0
    %617 = vmatpush1.msra.mxu0 0.0
    %618 = vmatprep.subr.mxu0 0.0
    %619 = vmatpush1.msra.mxu0 0.0
    %620 = vmatprep.subr.mxu0 0.0
    %621 = vmatpush1.msra.mxu0 0.0
    %622 = vmatprep.subr.mxu0 0.0
    %623 = vmatpush1.msra.mxu0 0.0
    %624 = vmatprep.subr.mxu0 0.0
    %625 = vmatpush1.msra.mxu0 0.0
    %626 = vmatprep.subr.mxu0 0.0
    %627 = vmatpush1.msra.mxu0 0.0
    %628 = vmatprep.subr.mxu0 0.0
    %629 = vmatpush1.msra.mxu0 0.0
    %630 = vmatprep.subr.mxu0 0.0
    %631 = vmatpush1.msra.mxu0 0.0
    %632 = vmatprep.subr.mxu0 0.0
    %633 = vmatpush1.msra.mxu0 0.0
    %634 = vmatprep.subr.mxu0 0.0
    %635 = vmatpush1.msra.mxu0 0.0
    %636 = vmatprep.subr.mxu0 0.0
    %637 = vmatpush1.msra.mxu0 0.0
    %638 = vmatprep.subr.mxu0 0.0
    %639 = vmatpush1.msra.mxu0 0.0
    %640 = vmatprep.subr.mxu0 0.0
    %641 = vmatpush1.msra.mxu0 0.0
    %642 = vmatprep.subr.mxu0 0.0
    %643 = vmatpush1.msra.mxu0 0.0
    %644 = vmatprep.subr.mxu0 0.0
    %645 = vmatpush1.msra.mxu0 0.0
    %646 = vmatprep.subr.mxu0 0.0
    %647 = vmatpush1.msra.mxu0 0.0
    %648 = vmatprep.subr.mxu0 0.0
    %649 = vmatpush1.msra.mxu0 0.0
    %650 = vmatprep.subr.mxu0 0.0
    %651 = vmatpush1.msra.mxu0 0.0
    %652 = vmatprep.subr.mxu0 0.0
    %653 = vmatpush1.msra.mxu0 0.0
    %654 = vmatprep.subr.mxu0 0.0
    %655 = vmatpush1.msra.mxu0 0.0
    %656 = vmatprep.subr.mxu0 0.0
    %657 = vmatpush1.msra.mxu0 0.0
    %658 = vmatprep.mubr.f32.mxu0 0.0
    %659 = vmatmul.mubr.f32.gmra.mrb[0].mxu0 %v589
    %v660 = vpop.f32.mrb[0].mxu0
    %v661 = vadd.f32 0.0, %v660
    %v662 = vpop.f32.mrb[0].mxu0
    %663 = vmatprep.mubr.f32.mxu0 0.0
    %664 = vmatmul.mubr.f32.gmra.mrb[0].mxu0 %v592
    %v665 = vpop.f32.mrb[0].mxu0
    %v666 = vadd.f32 0.0, %v665
    %v667 = vpop.f32.mrb[0].mxu0
    %668 = vdwg.mxu0
    %v669 = vmul.f32 %v161, %v286
    %v670 = vmul.f32 %v166, %v291
    %v671 = vmul.f32 %v161, %v161
    %v672 = vmul.f32 %v166, %v166
    %v673 = vmul.f32 %v286, %v286
    %v674 = vmul.f32 %v291, %v291
    %v675 = vmul.f32 %v669, 2.0
    %v676 = vmul.f32 %v670, 2.0
    %v678 = vlaneseq
    %v679 = vshrl.u32 %v678, 7
    %v680 = vsub.s32 0, %v679
    %v681 = vrot.slane %v29, %v680
    %v683 = vadd.f32 %v675, %v681
    %v684 = vadd.f32 %v676, %v681
    %v685 = vmul.f32 %v661, 49.0
    %v686 = vmul.f32 %v666, 49.0
    %v687 = vsub.f32 %v685, %v669
    %v688 = vsub.f32 %v686, %v670
    %v689 = vmul.f32 %v687, 2.0416667
    %v690 = vmul.f32 %v688, 2.0416667
    %v692 = vlaneseq
    %v693 = vshrl.u32 %v692, 7
    %v694 = vsub.s32 0, %v693
    %v695 = vrot.slane %v30, %v694
    %v697 = vadd.f32 %v689, %v695
    %v698 = vadd.f32 %v690, %v695
    %v699 = vadd.f32 %v671, %v673
    %v700 = vadd.f32 %v672, %v674
    %v701 = vadd.f32 %v699, %v681
    %v702 = vadd.f32 %v700, %v681
    %v703 = vadd.f32 %v411, %v536
    %v704 = vadd.f32 %v416, %v541
    %v705 = vmul.f32 %v703, 49.0
    %v706 = vmul.f32 %v704, 49.0
    %v707 = vsub.f32 %v705, %v671
    %v708 = vsub.f32 %v706, %v672
    %v709 = vsub.f32 %v707, %v673
    %v710 = vsub.f32 %v708, %v674
    %v711 = vmul.f32 %v709, 1.0208334
    %v712 = vmul.f32 %v710, 1.0208334
    %v713 = vadd.f32 %v711, %v695
    %v714 = vadd.f32 %v712, %v695
    %v715 = vmul.f32 %v701, %v713
    %v716 = vmul.f32 %v702, %v714
    %v717 = vrcp.pop %v715
    %v718 = vrcp.pop %v716
    %v719 = vmul.f32 %v715, %v717
    %v720 = vmul.f32 %v716, %v718
    %v721 = vsub.f32 2.0, %v719
    %v722 = vsub.f32 2.0, %v720
    %v723 = vmul.f32 %v717, %v721
    %v724 = vmul.f32 %v718, %v722
    %v725 = vmul.f32 %v683, %v697
    %v726 = vmul.f32 %v684, %v698
    %v727 = vmul.f32 %v725, %v723
    %v728 = vmul.f32 %v726, %v724
    %vm729 = vcmask 162816
    %v730 = vsel %vm729, %v727, 0.0
    %vm731 = vcmask 156672
    %v732 = vsel %vm731, %v728, 0.0
    %v733 = vadd.f32 %v730, %v732
    %v734 = vrot.slane %v733, 4
    %v735 = vadd.f32 %v733, %v734
    %v736 = vrot.slane %v735, 2
    %v737 = vadd.f32 %v735, %v736
    %v738 = vrot.slane %v737, 1
    %v739 = vadd.f32 %v737, %v738
    %vm740 = vcmask 155648
    %741 = vst.msk [vmem:[#allocation2] sm:$0x1] %vm740, %v739
    // Predicated region
    $region22: #{tpu_custom_call.1} parent=1 // pred_check
      _
    $region23: #{tpu_custom_call.1} parent=1 // pred_check_branch
      %743 = sbr.rel (0) target = $region25
    $region24: #{tpu_custom_call.1} parent=1 // pred_region
      %s745 = ssub.s32 16, 16
      %746 = vsyncadd [#allocation3], %s745
      %s748 = sshll.u32 [#allocation2], 4
      %s749 = int_to_ptr.vmem [resolvable:$true] %s748
      %751 = dma.vmem_to_hbm [thread:$0]  %s749, 16, %s5, [#allocation3]
    $region25: #{tpu_custom_call.1} parent=1 // pred_fallthru
      _
    // Predicated region
    $region26: #{tpu_custom_call.1} parent=1 // pred_check
      _
    $region27: #{tpu_custom_call.1} parent=1 // pred_check_branch
      %753 = sbr.rel (0) target = $region29
    $region28: #{tpu_custom_call.1} parent=1 // pred_region
      %754 = dma.done [#allocation3], 16
    $region29: #{tpu_custom_call.1} parent=1 // pred_fallthru
      _
    %755 = vsyncpa [#allocation3], 1

</llo_original>
